<compile_context>
chip_gen: v7x
topology: tpu7x:2x2x1
jax: 0.10.0
libtpu: 0.0.40
codegen_flags: <defaults>
</compile_context>

<pallas_src>
import jax
import jax.numpy as jnp
from jax.experimental import pallas as pl
from jax.experimental.pallas import tpu as pltpu

_LANE = 128
HIGHEST = jax.lax.Precision.HIGHEST


# --------------------------------------------------------------------------
# One-time weight repacking (hoisted out of the per-step path).
# --------------------------------------------------------------------------
def exrnn_pack_weights(w_h, b_h, w_o, b_o, input_size):
    """Repack PyTorch nn.Linear params (layout (out, in)) into lane-dense
    fused slabs.  Call once per parameter set; reuse for every step/sequence.

      w_x       : (I, n_pad)      x-projection slab   (cols [0:H]->hidden,
                                                        cols [H:H+O]->output)
      w_hh_step : (H, n_pad)      recurrent slab for the single-step kernel
      w_hh_seq  : (n_pad, n_pad)  recurrent slab zero-padded so the sequence
                                  kernel can carry the full lane-dense fused
                                  activation as its hidden state
      b         : (1, n_pad)      fused, lane-padded bias row
    """
    H = w_h.shape[0]
    O = w_o.shape[0]
    I = input_size
    N = H + O
    n_pad = pl.cdiv(N, _LANE) * _LANE

    w_fused = jnp.concatenate([w_h.T, w_o.T], axis=1)        # (I+H, N)
    w_fused = jnp.pad(w_fused, ((0, 0), (0, n_pad - N)))     # (I+H, n_pad)
    b_fused = jnp.pad(jnp.concatenate([b_h, b_o])[None, :],
                      ((0, 0), (0, n_pad - N)))              # (1, n_pad)

    w_x = w_fused[:I]                                        # (I, n_pad)
    w_hh_step = w_fused[I:I + H]                             # (H, n_pad)
    w_hh_seq = jnp.zeros((n_pad, n_pad), jnp.float32).at[:H].set(w_hh_step)

    return dict(w_x=w_x, w_hh_step=w_hh_step, w_hh_seq=w_hh_seq, b=b_fused,
                I=I, H=H, O=O, n_pad=n_pad)


# --------------------------------------------------------------------------
# Single-step kernel (exact ExRNN.forward semantics).
# --------------------------------------------------------------------------
def _exrnn_step_kernel(x_ref, h_ref, wx_ref, wh_ref, b_ref, fused_ref):
    # Split-K, fused-projection matmul: acc = x @ Wx + h @ Whh + b,
    # f32 accumulation, exact (HIGHEST) f32 contraction, one lane-dense store.
    acc = jnp.dot(x_ref[...], wx_ref[...],
                  preferred_element_type=jnp.float32, precision=HIGHEST)
    acc = acc + jnp.dot(h_ref[...], wh_ref[...],
                        preferred_element_type=jnp.float32, precision=HIGHEST)
    fused_ref[...] = acc + b_ref[...]


def exrnn_forward(x, hidden_state, packed):
    """One ExRNN.forward step.  Returns (output (B, O), hidden (B, H))."""
    B = x.shape[0]
    H, O, n_pad = packed["H"], packed["O"], packed["n_pad"]

    vmem = pl.BlockSpec(memory_space=pltpu.MemorySpace.VMEM)
    fused = pl.pallas_call(
        _exrnn_step_kernel,
        out_shape=jax.ShapeDtypeStruct((B, n_pad), jnp.float32),
        in_specs=[vmem, vmem, vmem, vmem, vmem],
        out_specs=vmem,
    )(x, hidden_state, packed["w_x"], packed["w_hh_step"], packed["b"])

    # Lane-dense kernel output; logical slices taken once outside the kernel.
    return fused[:, H:H + O], fused[:, :H]


# --------------------------------------------------------------------------
# Fused-sequence kernel: one pallas_call for the whole time loop.
# --------------------------------------------------------------------------
def _exrnn_seq_kernel(xproj_ref, h0_ref, wh_ref, b_ref, fused_ref, h_scratch):
    t = pl.program_id(1)

    @pl.when(t == 0)
    def _():
        # New sequence: load its lane-padded initial hidden state.
        h_scratch[...] = h0_ref[0]

    # Per-step critical path: one (B, n_pad) x (n_pad, n_pad) MXU pass.
    acc = xproj_ref[0, 0] + jnp.dot(
        h_scratch[...], wh_ref[...],
        preferred_element_type=jnp.float32, precision=HIGHEST)
    acc = acc + b_ref[...]

    fused_ref[0, 0] = acc
    # Carry the full fused activation; rows [H:] of w_hh_seq are zero, so only
    # the hidden columns feed the next step.
    h_scratch[...] = acc


def exrnn_forward_sequence(xs, h0, packed):
    """Drive the ExRNN cell over xs: (S, T, B, I) with initial hidden
    h0: (S, B, H).  Returns (outputs (S, T, B, O), hiddens (S, T, B, H)),
    identical to applying ExRNN.forward step-by-step."""
    S, T, B, I = xs.shape
    H, O, n_pad = packed["H"], packed["O"], packed["n_pad"]

    # Non-recurrent x-projection for the whole batch of sequences at full MXU
    # M-occupancy (M = S*T*B instead of M = B).  Plain XLA matmul.
    xproj = jnp.dot(xs.reshape(S * T * B, I), packed["w_x"],
                    precision=HIGHEST).reshape(S, T, B, n_pad)

    # Lane-padded initial hidden state (done once per call).
    h0_pad = jnp.pad(h0, ((0, 0), (0, 0), (0, n_pad - H)))

    fused = pl.pallas_call(
        _exrnn_seq_kernel,
        out_shape=jax.ShapeDtypeStruct((S, T, B, n_pad), jnp.float32),
        grid=(S, T),
        in_specs=[
            # per-step streamed activations
            pl.BlockSpec((1, 1, B, n_pad), lambda s, t: (s, t, 0, 0)),
            # per-sequence initial hidden state
            pl.BlockSpec((1, B, n_pad), lambda s, t: (s, 0, 0)),
            # recurrent weights + bias: constant index_map -> VMEM-resident
            pl.BlockSpec((n_pad, n_pad), lambda s, t: (0, 0)),
            pl.BlockSpec((1, n_pad), lambda s, t: (0, 0)),
        ],
        out_specs=pl.BlockSpec((1, 1, B, n_pad), lambda s, t: (s, t, 0, 0)),
        scratch_shapes=[pltpu.VMEM((B, n_pad), jnp.float32)],
        compiler_params=pltpu.CompilerParams(
            dimension_semantics=("parallel", "arbitrary")),
    )(xproj, h0_pad, packed["w_hh_seq"], packed["b"])

    # Slice the whole fused slab once (not per step).
    return fused[..., H:H + O], fused[..., :H]


# --------------------------------------------------------------------------
# Demo + correctness check.
# --------------------------------------------------------------------------
if __name__ == "__main__":
    batch = 8
    input_size = 128
    hidden_size = 32
    out_size = 2
    in_feat = input_size + hidden_size

    key = jax.random.PRNGKey(0)
    k_x, k_h, k_wh, k_bh, k_wo, k_bo, k_seq = jax.random.split(key, 7)

    # nn.Linear parameters in PyTorch layout: weight (out, in), bias (out,).
    w_h = jax.random.normal(k_wh, (hidden_size, in_feat), jnp.float32) * 0.05
    b_h = jax.random.normal(k_bh, (hidden_size,), jnp.float32) * 0.05
    w_o = jax.random.normal(k_wo, (out_size, in_feat), jnp.float32) * 0.05
    b_o = jax.random.normal(k_bo, (out_size,), jnp.float32) * 0.05

    packed = exrnn_pack_weights(w_h, b_h, w_o, b_o, input_size)

    # ---- single-step forward (exact ExRNN.forward semantics) ----
    x = jax.random.normal(k_x, (batch, input_size), jnp.float32)
    h = jax.random.normal(k_h, (batch, hidden_size), jnp.float32)
    output, hidden = exrnn_forward(x, h, packed)
    jax.block_until_ready((output, hidden))

    combined = jnp.concatenate([x, h], axis=1)
    ref_hidden = jnp.dot(combined, w_h.T, precision=HIGHEST) + b_h
    ref_output = jnp.dot(combined, w_o.T, precision=HIGHEST) + b_o
    assert output.shape == (batch, out_size)
    assert hidden.shape == (batch, hidden_size)
    assert jnp.allclose(output, ref_output, atol=1e-4, rtol=1e-4)
    assert jnp.allclose(hidden, ref_hidden, atol=1e-4, rtol=1e-4)

    # ---- fused-sequence forward (one pallas_call for the whole time loop) ----
    n_seq, seq_len = 2, 8
    xs = jax.random.normal(k_seq, (n_seq, seq_len, batch, input_size),
                           jnp.float32)
    h0 = jnp.zeros((n_seq, batch, hidden_size), jnp.float32)  # init_hidden
    outs, hids = exrnn_forward_sequence(xs, h0, packed)
    jax.block_until_ready((outs, hids))

    # Reference: unrolled python loop of the PyTorch forward.
    ref_outs, ref_hids = [], []
    for s in range(n_seq):
        h_ref = h0[s]
        o_seq, h_seq = [], []
        for t in range(seq_len):
            comb = jnp.concatenate([xs[s, t], h_ref], axis=1)
            o_t = jnp.dot(comb, w_o.T, precision=HIGHEST) + b_o
            h_ref = jnp.dot(comb, w_h.T, precision=HIGHEST) + b_h
            o_seq.append(o_t)
            h_seq.append(h_ref)
        ref_outs.append(jnp.stack(o_seq))
        ref_hids.append(jnp.stack(h_seq))
    ref_outs = jnp.stack(ref_outs)
    ref_hids = jnp.stack(ref_hids)

    assert outs.shape == (n_seq, seq_len, batch, out_size)
    assert hids.shape == (n_seq, seq_len, batch, hidden_size)
    assert jnp.allclose(outs, ref_outs, atol=1e-4, rtol=1e-4)
    assert jnp.allclose(hids, ref_hids, atol=1e-4, rtol=1e-4)

    print("KERNEL_OK")
</pallas_src>

<mosaic_0001>
module attributes {stable_mosaic.version = 11 : i64} {
  func.func @_exrnn_step_kernel(%arg0: memref<8x128xf32, #tpu.memory_space<vmem>>, %arg1: memref<8x32xf32, #tpu.memory_space<vmem>>, %arg2: memref<128x128xf32, #tpu.memory_space<vmem>>, %arg3: memref<32x128xf32, #tpu.memory_space<vmem>>, %arg4: memref<1x128xf32, #tpu.memory_space<vmem>>, %arg5: memref<8x128xf32, #tpu.memory_space<vmem>>) attributes {dimension_semantics = [], scalar_prefetch = 0 : i64, scratch_operands = 0 : i64, tpu.core_type = #tpu.core_type<tc>} {
    %c0 = arith.constant 0 : index
    %c0_0 = arith.constant 0 : index
    %0 = vector.load %arg0[%c0, %c0_0] : memref<8x128xf32, #tpu.memory_space<vmem>>, vector<8x128xf32>
    %c0_1 = arith.constant 0 : index
    %c0_2 = arith.constant 0 : index
    %1 = vector.load %arg2[%c0_1, %c0_2] : memref<128x128xf32, #tpu.memory_space<vmem>>, vector<128x128xf32>
    %cst = arith.constant dense<0.000000e+00> : vector<8x128xf32>
    %2 = tpu.matmul %0, %1, %cst {dimension_numbers = #tpu.dot_dimension_numbers<[1], [0], [0], [1], [0, 0, 1, 1], [], []>, precision = #tpu.contract_precision<fp32>} : vector<8x128xf32>, vector<128x128xf32>, vector<8x128xf32> -> vector<8x128xf32>
    %c0_3 = arith.constant 0 : index
    %c0_4 = arith.constant 0 : index
    %3 = vector.load %arg1[%c0_3, %c0_4] : memref<8x32xf32, #tpu.memory_space<vmem>>, vector<8x32xf32>
    %c0_5 = arith.constant 0 : index
    %c0_6 = arith.constant 0 : index
    %4 = vector.load %arg3[%c0_5, %c0_6] : memref<32x128xf32, #tpu.memory_space<vmem>>, vector<32x128xf32>
    %cst_7 = arith.constant dense<0.000000e+00> : vector<8x128xf32>
    %5 = tpu.matmul %3, %4, %cst_7 {dimension_numbers = #tpu.dot_dimension_numbers<[1], [0], [0], [1], [0, 0, 1, 1], [], []>, precision = #tpu.contract_precision<fp32>} : vector<8x32xf32>, vector<32x128xf32>, vector<8x128xf32> -> vector<8x128xf32>
    %6 = arith.addf %2, %5 : vector<8x128xf32>
    %c0_8 = arith.constant 0 : index
    %c0_9 = arith.constant 0 : index
    %7 = vector.load %arg4[%c0_8, %c0_9] : memref<1x128xf32, #tpu.memory_space<vmem>>, vector<1x128xf32>
    %8 = vector.broadcast %7 : vector<1x128xf32> to vector<8x128xf32>
    %9 = arith.addf %6, %8 : vector<8x128xf32>
    %c0_10 = arith.constant 0 : index
    %c0_11 = arith.constant 0 : index
    %10 = vector.load %arg5[%c0_10, %c0_11] : memref<8x128xf32, #tpu.memory_space<vmem>>, vector<8x128xf32>
    tpu.vector_store %arg5[%c0_10, %c0_11], %9 {strides = array<i32>} : memref<8x128xf32, #tpu.memory_space<vmem>>, vector<8x128xf32>,
    return
  }
}

</mosaic_0001>

<llo_original>
// kernel: tpu_custom_call.1
$region0: #{tpu_custom_call.1}
  #allocation0 [shape = 'u32[]', space=smem, size = 0x4, offset = 0x4, fixed_abs, tag = 'smem constant byte address 0x4 - core index']
  #allocation1 [shape = 'u32[144,128]{1,0:T(1,128)}', space=vmem, size = 0x12000, scoped, tag = 'internal scratch']
  %s0 = inlined_call_operand.hbm [shape: f32[8,128], index: 0, kind: input, shape index: {}]
  %s1 = inlined_call_operand.hbm [shape: f32[8,32], index: 1, kind: input, shape index: {}]
  %s2 = inlined_call_operand.hbm [shape: f32[128,128], index: 2, kind: input, shape index: {}]
  %s3 = inlined_call_operand.hbm [shape: f32[32,128], index: 3, kind: input, shape index: {}]
  %s4 = inlined_call_operand.vmem [shape: f32[1,128], index: 4, kind: input, shape index: {}]
  %s5 = inlined_call_operand.hbm [shape: f32[8,128], index: 5, kind: output, shape index: {}]
  %s6 = sld [smem:[#allocation0]]
  $region46: #{tpu_custom_call.1} parent=0
    _
  %s8 = ssub.s32 1, %s6
  %s9 = scalar_select 0, %s8, %s6
  $region1: #{tpu_custom_call.1} parent=0
    #allocation2 [shape = 'u8[4096]{0}', space=vmem, size = 0x1000, scoped, tag = 'input window, operand 0, single buffered']
    #allocation3 [shape = 's32[1]{0}', space=sflag, size = 0x4, scoped, tag = 'scoped memory for tpu_custom_call.1']
    #allocation4 [shape = 's32[1]{0}', space=sflag, size = 0x4, scoped, tag = 'scoped memory for tpu_custom_call.1']
    #allocation5 [shape = 'u8[4096]{0}', space=vmem, size = 0x1000, scoped, tag = 'input window, operand 1, single buffered']
    #allocation6 [shape = 's32[1]{0}', space=sflag, size = 0x4, scoped, tag = 'scoped memory for tpu_custom_call.1']
    #allocation7 [shape = 'u8[65536]{0}', space=vmem, size = 0x10000, scoped, tag = 'input window, operand 2, single buffered']
    #allocation8 [shape = 'u8[16384]{0}', space=vmem, size = 0x4000, scoped, tag = 'input window, operand 3, single buffered']
    #allocation9 [shape = 's32[1]{0}', space=sflag, size = 0x4, scoped, tag = 'scoped memory for tpu_custom_call.1']
    #allocation10 [shape = 'u8[4096]{0}', space=vmem, size = 0x1000, scoped, tag = 'output window, operand 0, single buffered']
    %10 = vsyncpa [#allocation3], 0
    %11 = vsyncpa [#allocation6], 0
    %12 = vsyncpa [#allocation9], 0
    %13 = vsyncpa [#allocation4], 0
    // Predicated region
    $region2: #{tpu_custom_call.1} parent=1 // pred_check
      _
    $region3: #{tpu_custom_call.1} parent=1 // pred_check_branch
      %15 = sbr.rel (0) target = $region5
    $region4: #{tpu_custom_call.1} parent=1 // pred_region
      %s17 = ssub.s32 128, 128
      %18 = vsyncadd [#allocation3], %s17
      %s20 = sshll.u32 [#allocation2], 4
      %s21 = int_to_ptr.vmem [resolvable:$true] %s20
      %23 = dma.hbm_to_vmem [thread:$0]  %s0, 128, %s21, [#allocation3]
    $region5: #{tpu_custom_call.1} parent=1 // pred_fallthru
      _
    // Predicated region
    $region6: #{tpu_custom_call.1} parent=1 // pred_check
      _
    $region7: #{tpu_custom_call.1} parent=1 // pred_check_branch
      %25 = sbr.rel (0) target = $region9
    $region8: #{tpu_custom_call.1} parent=1 // pred_region
      %s27 = ssub.s32 128, 128
      %28 = vsyncadd [#allocation6], %s27
      %s30 = sshll.u32 [#allocation5], 4
      %s31 = int_to_ptr.vmem [resolvable:$true] %s30
      %33 = dma.hbm_to_vmem [thread:$0]  %s1, 128, %s31, [#allocation6]
    $region9: #{tpu_custom_call.1} parent=1 // pred_fallthru
      _
    // Predicated region
    $region10: #{tpu_custom_call.1} parent=1 // pred_check
      _
    $region11: #{tpu_custom_call.1} parent=1 // pred_check_branch
      %35 = sbr.rel (0) target = $region13
    $region12: #{tpu_custom_call.1} parent=1 // pred_region
      %s37 = ssub.s32 2048, 2048
      %38 = vsyncadd [#allocation6], %s37
      %s39 = sshll.u32 [#allocation7], 4
      %s40 = int_to_ptr.vmem [resolvable:$true] %s39
      %45 = dma.hbm_to_vmem [thread:$0]  %s2, 2048, %s40, [#allocation6], 128, 128, 8
    $region13: #{tpu_custom_call.1} parent=1 // pred_fallthru
      _
    // Predicated region
    $region14: #{tpu_custom_call.1} parent=1 // pred_check
      _
    $region15: #{tpu_custom_call.1} parent=1 // pred_check_branch
      %47 = sbr.rel (0) target = $region17
    $region16: #{tpu_custom_call.1} parent=1 // pred_region
      %s49 = ssub.s32 512, 512
      %50 = vsyncadd [#allocation9], %s49
      %s51 = sshll.u32 [#allocation8], 4
      %s52 = int_to_ptr.vmem [resolvable:$true] %s51
      %57 = dma.hbm_to_vmem [thread:$0]  %s3, 512, %s52, [#allocation9], 128, 128, 8
    $region17: #{tpu_custom_call.1} parent=1 // pred_fallthru
      _
    // Predicated region
    $region18: #{tpu_custom_call.1} parent=1 // pred_check
      _
    $region19: #{tpu_custom_call.1} parent=1 // pred_check_branch
      %59 = sbr.rel (0) target = $region21
    $region20: #{tpu_custom_call.1} parent=1 // pred_region
      _
    $region21: #{tpu_custom_call.1} parent=1 // pred_fallthru
      _
    // Predicated region
    $region22: #{tpu_custom_call.1} parent=1 // pred_check
      _
    $region23: #{tpu_custom_call.1} parent=1 // pred_check_branch
      %61 = sbr.rel (0) target = $region25
    $region24: #{tpu_custom_call.1} parent=1 // pred_region
      %62 = dma.done [#allocation3], 128
    $region25: #{tpu_custom_call.1} parent=1 // pred_fallthru
      _
    // Predicated region
    $region26: #{tpu_custom_call.1} parent=1 // pred_check
      _
    $region27: #{tpu_custom_call.1} parent=1 // pred_check_branch
      %64 = sbr.rel (0) target = $region29
    $region28: #{tpu_custom_call.1} parent=1 // pred_region
      %65 = dma.done [#allocation6], 128
    $region29: #{tpu_custom_call.1} parent=1 // pred_fallthru
      _
    // Predicated region
    $region30: #{tpu_custom_call.1} parent=1 // pred_check
      _
    $region31: #{tpu_custom_call.1} parent=1 // pred_check_branch
      %67 = sbr.rel (0) target = $region33
    $region32: #{tpu_custom_call.1} parent=1 // pred_region
      %68 = dma.done [#allocation6], 2048
    $region33: #{tpu_custom_call.1} parent=1 // pred_fallthru
      _
    // Predicated region
    $region34: #{tpu_custom_call.1} parent=1 // pred_check
      _
    $region35: #{tpu_custom_call.1} parent=1 // pred_check_branch
      %70 = sbr.rel (0) target = $region37
    $region36: #{tpu_custom_call.1} parent=1 // pred_region
      %71 = dma.done [#allocation9], 512
    $region37: #{tpu_custom_call.1} parent=1 // pred_fallthru
      _
    %v72 = vld [vmem:[#allocation2] sm:$0xff]
    %v73 = vld [vmem:[#allocation7] sm:$0xff]
    %v74 = vld [vmem:[#allocation7 + $0x8] sm:$0xff]
    %v75 = vld [vmem:[#allocation7 + $0x10] sm:$0xff]
    %v76 = vld [vmem:[#allocation7 + $0x18] sm:$0xff]
    %v77 = vld [vmem:[#allocation7 + $0x20] sm:$0xff]
    %v78 = vld [vmem:[#allocation7 + $0x28] sm:$0xff]
    %v79 = vld [vmem:[#allocation7 + $0x30] sm:$0xff]
    %v80 = vld [vmem:[#allocation7 + $0x38] sm:$0xff]
    %v81 = vld [vmem:[#allocation7 + $0x40] sm:$0xff]
    %v82 = vld [vmem:[#allocation7 + $0x48] sm:$0xff]
    %v83 = vld [vmem:[#allocation7 + $0x50] sm:$0xff]
    %v84 = vld [vmem:[#allocation7 + $0x58] sm:$0xff]
    %v85 = vld [vmem:[#allocation7 + $0x60] sm:$0xff]
    %v86 = vld [vmem:[#allocation7 + $0x68] sm:$0xff]
    %v87 = vld [vmem:[#allocation7 + $0x70] sm:$0xff]
    %v88 = vld [vmem:[#allocation7 + $0x78] sm:$0xff]
    %v89 = vld [vmem:[#allocation5] sm:$0xff]
    %v90 = vld [vmem:[#allocation8] sm:$0xff]
    %v91 = vld [vmem:[#allocation8 + $0x8] sm:$0xff]
    %v92 = vld [vmem:[#allocation8 + $0x10] sm:$0xff]
    %v93 = vld [vmem:[#allocation8 + $0x18] sm:$0xff]
    %vm94 = vcmask 261120
    %v96 = vsel %vm94, %v89, 0
    %98 = vmatprep.subr.mxu0 0.0
    %v99 = vand.u32 %v90, 4294901760
    %100 = vmatpush1.msra.mxu0 %v99
    %101 = vmatprep.subr.mxu0 0.0
    %v102 = vand.u32 %v91, 4294901760
    %103 = vmatpush1.msra.mxu0 %v102
    %104 = vmatprep.subr.mxu0 0.0
    %v105 = vand.u32 %v92, 4294901760
    %106 = vmatpush1.msra.mxu0 %v105
    %107 = vmatprep.subr.mxu0 0.0
    %v108 = vand.u32 %v93, 4294901760
    %109 = vmatpush1.msra.mxu0 %v108
    %110 = vmatprep.subr.mxu0 0.0
    %111 = vmatpush1.msra.mxu0 0.0
    %112 = vmatprep.subr.mxu0 0.0
    %113 = vmatpush1.msra.mxu0 0.0
    %114 = vmatprep.subr.mxu0 0.0
    %115 = vmatpush1.msra.mxu0 0.0
    %116 = vmatprep.subr.mxu0 0.0
    %117 = vmatpush1.msra.mxu0 0.0
    %118 = vmatprep.subr.mxu0 0.0
    %119 = vmatpush1.msra.mxu0 0.0
    %120 = vmatprep.subr.mxu0 0.0
    %121 = vmatpush1.msra.mxu0 0.0
    %122 = vmatprep.subr.mxu0 0.0
    %123 = vmatpush1.msra.mxu0 0.0
    %124 = vmatprep.subr.mxu0 0.0
    %125 = vmatpush1.msra.mxu0 0.0
    %126 = vmatprep.subr.mxu0 0.0
    %127 = vmatpush1.msra.mxu0 0.0
    %128 = vmatprep.subr.mxu0 0.0
    %129 = vmatpush1.msra.mxu0 0.0
    %130 = vmatprep.subr.mxu0 0.0
    %131 = vmatpush1.msra.mxu0 0.0
    %132 = vmatprep.subr.mxu0 0.0
    %133 = vmatpush1.msra.mxu0 0.0
    %134 = vmatprep.subr.mxu0 0.0
    %135 = vmatpush1.msra.mxu0 0.0
    %136 = vmatprep.subr.mxu0 0.0
    %137 = vmatpush1.msra.mxu0 0.0
    %138 = vmatprep.subr.mxu0 0.0
    %139 = vmatpush1.msra.mxu0 0.0
    %140 = vmatprep.subr.mxu0 0.0
    %141 = vmatpush1.msra.mxu0 0.0
    %142 = vmatprep.subr.mxu0 0.0
    %143 = vmatpush1.msra.mxu0 0.0
    %144 = vmatprep.subr.mxu0 0.0
    %145 = vmatpush1.msra.mxu0 0.0
    %146 = vmatprep.subr.mxu0 0.0
    %147 = vmatpush1.msra.mxu0 0.0
    %148 = vmatprep.subr.mxu0 0.0
    %149 = vmatpush1.msra.mxu0 0.0
    %150 = vmatprep.subr.mxu0 0.0
    %151 = vmatpush1.msra.mxu0 0.0
    %152 = vmatprep.subr.mxu0 0.0
    %153 = vmatpush1.msra.mxu0 0.0
    %154 = vmatprep.subr.mxu0 0.0
    %155 = vmatpush1.msra.mxu0 0.0
    %156 = vmatprep.subr.mxu0 0.0
    %157 = vmatpush1.msra.mxu0 0.0
    %158 = vmatprep.subr.mxu0 0.0
    %159 = vmatpush1.msra.mxu0 0.0
    %160 = vmatprep.subr.mxu0 0.0
    %161 = vmatpush1.msra.mxu0 0.0
    %162 = vmatprep.subr.mxu0 0.0
    %163 = vmatpush1.msra.mxu0 0.0
    %164 = vmatprep.subr.mxu0 0.0
    %165 = vmatpush1.msra.mxu0 0.0
    %166 = vmatprep.mubr.f32.mxu0 0.0
    %v167 = vand.u32 %v96, 4294901760
    %v168 = vsub.f32 %v96, %v167
    %v169 = vand.u32 %v168, 4294901760
    %v170 = vsub.f32 %v168, %v169
    %v171 = vand.u32 %v170, 4294901760
    %172 = vmatmul.mubr.f32.gmra.mrb[0].mxu0 %v171
    %v173 = vpop.f32.mrb[0].mxu0
    %v174 = vadd.f32 0.0, %v173
    %v175 = vpop.f32.mrb[0].mxu0
    %176 = vdwg.mxu0
    %177 = vmatprep.subr.mxu0 0.0
    %v178 = vand.u32 %v90, 4294901760
    %v179 = vsub.f32 %v90, %v178
    %v180 = vand.u32 %v179, 4294901760
    %v181 = vsub.f32 %v179, %v180
    %v182 = vand.u32 %v181, 4294901760
    %183 = vmatpush1.msra.mxu0 %v182
    %184 = vmatprep.subr.mxu0 0.0
    %v185 = vand.u32 %v91, 4294901760
    %v186 = vsub.f32 %v91, %v185
    %v187 = vand.u32 %v186, 4294901760
    %v188 = vsub.f32 %v186, %v187
    %v189 = vand.u32 %v188, 4294901760
    %190 = vmatpush1.msra.mxu0 %v189
    %191 = vmatprep.subr.mxu0 0.0
    %v192 = vand.u32 %v92, 4294901760
    %v193 = vsub.f32 %v92, %v192
    %v194 = vand.u32 %v193, 4294901760
    %v195 = vsub.f32 %v193, %v194
    %v196 = vand.u32 %v195, 4294901760
    %197 = vmatpush1.msra.mxu0 %v196
    %198 = vmatprep.subr.mxu0 0.0
    %v199 = vand.u32 %v93, 4294901760
    %v200 = vsub.f32 %v93, %v199
    %v201 = vand.u32 %v200, 4294901760
    %v202 = vsub.f32 %v200, %v201
    %v203 = vand.u32 %v202, 4294901760
    %204 = vmatpush1.msra.mxu0 %v203
    %205 = vmatprep.subr.mxu0 0.0
    %206 = vmatpush1.msra.mxu0 0.0
    %207 = vmatprep.subr.mxu0 0.0
    %208 = vmatpush1.msra.mxu0 0.0
    %209 = vmatprep.subr.mxu0 0.0
    %210 = vmatpush1.msra.mxu0 0.0
    %211 = vmatprep.subr.mxu0 0.0
    %212 = vmatpush1.msra.mxu0 0.0
    %213 = vmatprep.subr.mxu0 0.0
    %214 = vmatpush1.msra.mxu0 0.0
    %215 = vmatprep.subr.mxu0 0.0
    %216 = vmatpush1.msra.mxu0 0.0
    %217 = vmatprep.subr.mxu0 0.0
    %218 = vmatpush1.msra.mxu0 0.0
    %219 = vmatprep.subr.mxu0 0.0
    %220 = vmatpush1.msra.mxu0 0.0
    %221 = vmatprep.subr.mxu0 0.0
    %222 = vmatpush1.msra.mxu0 0.0
    %223 = vmatprep.subr.mxu0 0.0
    %224 = vmatpush1.msra.mxu0 0.0
    %225 = vmatprep.subr.mxu0 0.0
    %226 = vmatpush1.msra.mxu0 0.0
    %227 = vmatprep.subr.mxu0 0.0
    %228 = vmatpush1.msra.mxu0 0.0
    %229 = vmatprep.subr.mxu0 0.0
    %230 = vmatpush1.msra.mxu0 0.0
    %231 = vmatprep.subr.mxu0 0.0
    %232 = vmatpush1.msra.mxu0 0.0
    %233 = vmatprep.subr.mxu0 0.0
    %234 = vmatpush1.msra.mxu0 0.0
    %235 = vmatprep.subr.mxu0 0.0
    %236 = vmatpush1.msra.mxu0 0.0
    %237 = vmatprep.subr.mxu0 0.0
    %238 = vmatpush1.msra.mxu0 0.0
    %239 = vmatprep.subr.mxu0 0.0
    %240 = vmatpush1.msra.mxu0 0.0
    %241 = vmatprep.subr.mxu0 0.0
    %242 = vmatpush1.msra.mxu0 0.0
    %243 = vmatprep.subr.mxu0 0.0
    %244 = vmatpush1.msra.mxu0 0.0
    %245 = vmatprep.subr.mxu0 0.0
    %246 = vmatpush1.msra.mxu0 0.0
    %247 = vmatprep.subr.mxu0 0.0
    %248 = vmatpush1.msra.mxu0 0.0
    %249 = vmatprep.subr.mxu0 0.0
    %250 = vmatpush1.msra.mxu0 0.0
    %251 = vmatprep.subr.mxu0 0.0
    %252 = vmatpush1.msra.mxu0 0.0
    %253 = vmatprep.subr.mxu0 0.0
    %254 = vmatpush1.msra.mxu0 0.0
    %255 = vmatprep.subr.mxu0 0.0
    %256 = vmatpush1.msra.mxu0 0.0
    %257 = vmatprep.subr.mxu0 0.0
    %258 = vmatpush1.msra.mxu0 0.0
    %259 = vmatprep.subr.mxu0 0.0
    %260 = vmatpush1.msra.mxu0 0.0
    %261 = vmatprep.mubr.f32.mxu0 0.0
    %v262 = vand.u32 %v96, 4294901760
    %263 = vmatmul.mubr.f32.gmra.mrb[0].mxu0 %v262
    %v264 = vpop.f32.mrb[0].mxu0
    %v265 = vadd.f32 %v174, %v264
    %v266 = vpop.f32.mrb[0].mxu0
    %267 = vdwg.mxu0
    %268 = vmatprep.subr.mxu0 0.0
    %v269 = vand.u32 %v90, 4294901760
    %v270 = vsub.f32 %v90, %v269
    %271 = vmatpush1.msra.mxu0 %v270
    %272 = vmatprep.subr.mxu0 0.0
    %v273 = vand.u32 %v91, 4294901760
    %v274 = vsub.f32 %v91, %v273
    %275 = vmatpush1.msra.mxu0 %v274
    %276 = vmatprep.subr.mxu0 0.0
    %v277 = vand.u32 %v92, 4294901760
    %v278 = vsub.f32 %v92, %v277
    %279 = vmatpush1.msra.mxu0 %v278
    %280 = vmatprep.subr.mxu0 0.0
    %v281 = vand.u32 %v93, 4294901760
    %v282 = vsub.f32 %v93, %v281
    %283 = vmatpush1.msra.mxu0 %v282
    %284 = vmatprep.subr.mxu0 0.0
    %285 = vmatpush1.msra.mxu0 0.0
    %286 = vmatprep.subr.mxu0 0.0
    %287 = vmatpush1.msra.mxu0 0.0
    %288 = vmatprep.subr.mxu0 0.0
    %289 = vmatpush1.msra.mxu0 0.0
    %290 = vmatprep.subr.mxu0 0.0
    %291 = vmatpush1.msra.mxu0 0.0
    %292 = vmatprep.subr.mxu0 0.0
    %293 = vmatpush1.msra.mxu0 0.0
    %294 = vmatprep.subr.mxu0 0.0
    %295 = vmatpush1.msra.mxu0 0.0
    %296 = vmatprep.subr.mxu0 0.0
    %297 = vmatpush1.msra.mxu0 0.0
    %298 = vmatprep.subr.mxu0 0.0
    %299 = vmatpush1.msra.mxu0 0.0
    %300 = vmatprep.subr.mxu0 0.0
    %301 = vmatpush1.msra.mxu0 0.0
    %302 = vmatprep.subr.mxu0 0.0
    %303 = vmatpush1.msra.mxu0 0.0
    %304 = vmatprep.subr.mxu0 0.0
    %305 = vmatpush1.msra.mxu0 0.0
    %306 = vmatprep.subr.mxu0 0.0
    %307 = vmatpush1.msra.mxu0 0.0
    %308 = vmatprep.subr.mxu0 0.0
    %309 = vmatpush1.msra.mxu0 0.0
    %310 = vmatprep.subr.mxu0 0.0
    %311 = vmatpush1.msra.mxu0 0.0
    %312 = vmatprep.subr.mxu0 0.0
    %313 = vmatpush1.msra.mxu0 0.0
    %314 = vmatprep.subr.mxu0 0.0
    %315 = vmatpush1.msra.mxu0 0.0
    %316 = vmatprep.subr.mxu0 0.0
    %317 = vmatpush1.msra.mxu0 0.0
    %318 = vmatprep.subr.mxu0 0.0
    %319 = vmatpush1.msra.mxu0 0.0
    %320 = vmatprep.subr.mxu0 0.0
    %321 = vmatpush1.msra.mxu0 0.0
    %322 = vmatprep.subr.mxu0 0.0
    %323 = vmatpush1.msra.mxu0 0.0
    %324 = vmatprep.subr.mxu0 0.0
    %325 = vmatpush1.msra.mxu0 0.0
    %326 = vmatprep.subr.mxu0 0.0
    %327 = vmatpush1.msra.mxu0 0.0
    %328 = vmatprep.subr.mxu0 0.0
    %329 = vmatpush1.msra.mxu0 0.0
    %330 = vmatprep.subr.mxu0 0.0
    %331 = vmatpush1.msra.mxu0 0.0
    %332 = vmatprep.subr.mxu0 0.0
    %333 = vmatpush1.msra.mxu0 0.0
    %334 = vmatprep.subr.mxu0 0.0
    %335 = vmatpush1.msra.mxu0 0.0
    %336 = vmatprep.subr.mxu0 0.0
    %337 = vmatpush1.msra.mxu0 0.0
    %338 = vmatprep.subr.mxu0 0.0
    %339 = vmatpush1.msra.mxu0 0.0
    %340 = vmatprep.mubr.f32.mxu0 0.0
    %v341 = vand.u32 %v96, 4294901760
    %v342 = vsub.f32 %v96, %v341
    %343 = vmatmul.mubr.f32.gmra.mrb[0].mxu0 %v342
    %v344 = vpop.f32.mrb[0].mxu0
    %v345 = vadd.f32 %v265, %v344
    %v346 = vpop.f32.mrb[0].mxu0
    %347 = vdwg.mxu0
    %348 = vmatprep.subr.mxu0 0.0
    %v349 = vand.u32 %v90, 4294901760
    %350 = vmatpush1.msra.mxu0 %v349
    %351 = vmatprep.subr.mxu0 0.0
    %v352 = vand.u32 %v91, 4294901760
    %353 = vmatpush1.msra.mxu0 %v352
    %354 = vmatprep.subr.mxu0 0.0
    %v355 = vand.u32 %v92, 4294901760
    %356 = vmatpush1.msra.mxu0 %v355
    %357 = vmatprep.subr.mxu0 0.0
    %v358 = vand.u32 %v93, 4294901760
    %359 = vmatpush1.msra.mxu0 %v358
    %360 = vmatprep.subr.mxu0 0.0
    %361 = vmatpush1.msra.mxu0 0.0
    %362 = vmatprep.subr.mxu0 0.0
    %363 = vmatpush1.msra.mxu0 0.0
    %364 = vmatprep.subr.mxu0 0.0
    %365 = vmatpush1.msra.mxu0 0.0
    %366 = vmatprep.subr.mxu0 0.0
    %367 = vmatpush1.msra.mxu0 0.0
    %368 = vmatprep.subr.mxu0 0.0
    %369 = vmatpush1.msra.mxu0 0.0
    %370 = vmatprep.subr.mxu0 0.0
    %371 = vmatpush1.msra.mxu0 0.0
    %372 = vmatprep.subr.mxu0 0.0
    %373 = vmatpush1.msra.mxu0 0.0
    %374 = vmatprep.subr.mxu0 0.0
    %375 = vmatpush1.msra.mxu0 0.0
    %376 = vmatprep.subr.mxu0 0.0
    %377 = vmatpush1.msra.mxu0 0.0
    %378 = vmatprep.subr.mxu0 0.0
    %379 = vmatpush1.msra.mxu0 0.0
    %380 = vmatprep.subr.mxu0 0.0
    %381 = vmatpush1.msra.mxu0 0.0
    %382 = vmatprep.subr.mxu0 0.0
    %383 = vmatpush1.msra.mxu0 0.0
    %384 = vmatprep.subr.mxu0 0.0
    %385 = vmatpush1.msra.mxu0 0.0
    %386 = vmatprep.subr.mxu0 0.0
    %387 = vmatpush1.msra.mxu0 0.0
    %388 = vmatprep.subr.mxu0 0.0
    %389 = vmatpush1.msra.mxu0 0.0
    %390 = vmatprep.subr.mxu0 0.0
    %391 = vmatpush1.msra.mxu0 0.0
    %392 = vmatprep.subr.mxu0 0.0
    %393 = vmatpush1.msra.mxu0 0.0
    %394 = vmatprep.subr.mxu0 0.0
    %395 = vmatpush1.msra.mxu0 0.0
    %396 = vmatprep.subr.mxu0 0.0
    %397 = vmatpush1.msra.mxu0 0.0
    %398 = vmatprep.subr.mxu0 0.0
    %399 = vmatpush1.msra.mxu0 0.0
    %400 = vmatprep.subr.mxu0 0.0
    %401 = vmatpush1.msra.mxu0 0.0
    %402 = vmatprep.subr.mxu0 0.0
    %403 = vmatpush1.msra.mxu0 0.0
    %404 = vmatprep.subr.mxu0 0.0
    %405 = vmatpush1.msra.mxu0 0.0
    %406 = vmatprep.subr.mxu0 0.0
    %407 = vmatpush1.msra.mxu0 0.0
    %408 = vmatprep.subr.mxu0 0.0
    %409 = vmatpush1.msra.mxu0 0.0
    %410 = vmatprep.subr.mxu0 0.0
    %411 = vmatpush1.msra.mxu0 0.0
    %412 = vmatprep.subr.mxu0 0.0
    %413 = vmatpush1.msra.mxu0 0.0
    %414 = vmatprep.subr.mxu0 0.0
    %415 = vmatpush1.msra.mxu0 0.0
    %416 = vmatprep.mubr.f32.mxu0 0.0
    %v417 = vand.u32 %v96, 4294901760
    %v418 = vsub.f32 %v96, %v417
    %v419 = vand.u32 %v418, 4294901760
    %420 = vmatmul.mubr.f32.gmra.mrb[0].mxu0 %v419
    %v421 = vpop.f32.mrb[0].mxu0
    %v422 = vadd.f32 %v345, %v421
    %v423 = vpop.f32.mrb[0].mxu0
    %424 = vdwg.mxu0
    %425 = vmatprep.subr.mxu0 0.0
    %v426 = vand.u32 %v90, 4294901760
    %v427 = vsub.f32 %v90, %v426
    %v428 = vand.u32 %v427, 4294901760
    %429 = vmatpush1.msra.mxu0 %v428
    %430 = vmatprep.subr.mxu0 0.0
    %v431 = vand.u32 %v91, 4294901760
    %v432 = vsub.f32 %v91, %v431
    %v433 = vand.u32 %v432, 4294901760
    %434 = vmatpush1.msra.mxu0 %v433
    %435 = vmatprep.subr.mxu0 0.0
    %v436 = vand.u32 %v92, 4294901760
    %v437 = vsub.f32 %v92, %v436
    %v438 = vand.u32 %v437, 4294901760
    %439 = vmatpush1.msra.mxu0 %v438
    %440 = vmatprep.subr.mxu0 0.0
    %v441 = vand.u32 %v93, 4294901760
    %v442 = vsub.f32 %v93, %v441
    %v443 = vand.u32 %v442, 4294901760
    %444 = vmatpush1.msra.mxu0 %v443
    %445 = vmatprep.subr.mxu0 0.0
    %446 = vmatpush1.msra.mxu0 0.0
    %447 = vmatprep.subr.mxu0 0.0
    %448 = vmatpush1.msra.mxu0 0.0
    %449 = vmatprep.subr.mxu0 0.0
    %450 = vmatpush1.msra.mxu0 0.0
    %451 = vmatprep.subr.mxu0 0.0
    %452 = vmatpush1.msra.mxu0 0.0
    %453 = vmatprep.subr.mxu0 0.0
    %454 = vmatpush1.msra.mxu0 0.0
    %455 = vmatprep.subr.mxu0 0.0
    %456 = vmatpush1.msra.mxu0 0.0
    %457 = vmatprep.subr.mxu0 0.0
    %458 = vmatpush1.msra.mxu0 0.0
    %459 = vmatprep.subr.mxu0 0.0
    %460 = vmatpush1.msra.mxu0 0.0
    %461 = vmatprep.subr.mxu0 0.0
    %462 = vmatpush1.msra.mxu0 0.0
    %463 = vmatprep.subr.mxu0 0.0
    %464 = vmatpush1.msra.mxu0 0.0
    %465 = vmatprep.subr.mxu0 0.0
    %466 = vmatpush1.msra.mxu0 0.0
    %467 = vmatprep.subr.mxu0 0.0
    %468 = vmatpush1.msra.mxu0 0.0
    %469 = vmatprep.subr.mxu0 0.0
    %470 = vmatpush1.msra.mxu0 0.0
    %471 = vmatprep.subr.mxu0 0.0
    %472 = vmatpush1.msra.mxu0 0.0
    %473 = vmatprep.subr.mxu0 0.0
    %474 = vmatpush1.msra.mxu0 0.0
    %475 = vmatprep.subr.mxu0 0.0
    %476 = vmatpush1.msra.mxu0 0.0
    %477 = vmatprep.subr.mxu0 0.0
    %478 = vmatpush1.msra.mxu0 0.0
    %479 = vmatprep.subr.mxu0 0.0
    %480 = vmatpush1.msra.mxu0 0.0
    %481 = vmatprep.subr.mxu0 0.0
    %482 = vmatpush1.msra.mxu0 0.0
    %483 = vmatprep.subr.mxu0 0.0
    %484 = vmatpush1.msra.mxu0 0.0
    %485 = vmatprep.subr.mxu0 0.0
    %486 = vmatpush1.msra.mxu0 0.0
    %487 = vmatprep.subr.mxu0 0.0
    %488 = vmatpush1.msra.mxu0 0.0
    %489 = vmatprep.subr.mxu0 0.0
    %490 = vmatpush1.msra.mxu0 0.0
    %491 = vmatprep.subr.mxu0 0.0
    %492 = vmatpush1.msra.mxu0 0.0
    %493 = vmatprep.subr.mxu0 0.0
    %494 = vmatpush1.msra.mxu0 0.0
    %495 = vmatprep.subr.mxu0 0.0
    %496 = vmatpush1.msra.mxu0 0.0
    %497 = vmatprep.subr.mxu0 0.0
    %498 = vmatpush1.msra.mxu0 0.0
    %499 = vmatprep.subr.mxu0 0.0
    %500 = vmatpush1.msra.mxu0 0.0
    %501 = vmatprep.mubr.f32.mxu0 0.0
    %v502 = vand.u32 %v96, 4294901760
    %503 = vmatmul.mubr.f32.gmra.mrb[0].mxu0 %v502
    %v504 = vpop.f32.mrb[0].mxu0
    %v505 = vadd.f32 %v422, %v504
    %v506 = vpop.f32.mrb[0].mxu0
    %507 = vdwg.mxu0
    %508 = vmatprep.subr.mxu0 0.0
    %v509 = vand.u32 %v90, 4294901760
    %510 = vmatpush1.msra.mxu0 %v509
    %511 = vmatprep.subr.mxu0 0.0
    %v512 = vand.u32 %v91, 4294901760
    %513 = vmatpush1.msra.mxu0 %v512
    %514 = vmatprep.subr.mxu0 0.0
    %v515 = vand.u32 %v92, 4294901760
    %516 = vmatpush1.msra.mxu0 %v515
    %517 = vmatprep.subr.mxu0 0.0
    %v518 = vand.u32 %v93, 4294901760
    %519 = vmatpush1.msra.mxu0 %v518
    %520 = vmatprep.subr.mxu0 0.0
    %521 = vmatpush1.msra.mxu0 0.0
    %522 = vmatprep.subr.mxu0 0.0
    %523 = vmatpush1.msra.mxu0 0.0
    %524 = vmatprep.subr.mxu0 0.0
    %525 = vmatpush1.msra.mxu0 0.0
    %526 = vmatprep.subr.mxu0 0.0
    %527 = vmatpush1.msra.mxu0 0.0
    %528 = vmatprep.subr.mxu0 0.0
    %529 = vmatpush1.msra.mxu0 0.0
    %530 = vmatprep.subr.mxu0 0.0
    %531 = vmatpush1.msra.mxu0 0.0
    %532 = vmatprep.subr.mxu0 0.0
    %533 = vmatpush1.msra.mxu0 0.0
    %534 = vmatprep.subr.mxu0 0.0
    %535 = vmatpush1.msra.mxu0 0.0
    %536 = vmatprep.subr.mxu0 0.0
    %537 = vmatpush1.msra.mxu0 0.0
    %538 = vmatprep.subr.mxu0 0.0
    %539 = vmatpush1.msra.mxu0 0.0
    %540 = vmatprep.subr.mxu0 0.0
    %541 = vmatpush1.msra.mxu0 0.0
    %542 = vmatprep.subr.mxu0 0.0
    %543 = vmatpush1.msra.mxu0 0.0
    %544 = vmatprep.subr.mxu0 0.0
    %545 = vmatpush1.msra.mxu0 0.0
    %546 = vmatprep.subr.mxu0 0.0
    %547 = vmatpush1.msra.mxu0 0.0
    %548 = vmatprep.subr.mxu0 0.0
    %549 = vmatpush1.msra.mxu0 0.0
    %550 = vmatprep.subr.mxu0 0.0
    %551 = vmatpush1.msra.mxu0 0.0
    %552 = vmatprep.subr.mxu0 0.0
    %553 = vmatpush1.msra.mxu0 0.0
    %554 = vmatprep.subr.mxu0 0.0
    %555 = vmatpush1.msra.mxu0 0.0
    %556 = vmatprep.subr.mxu0 0.0
    %557 = vmatpush1.msra.mxu0 0.0
    %558 = vmatprep.subr.mxu0 0.0
    %559 = vmatpush1.msra.mxu0 0.0
    %560 = vmatprep.subr.mxu0 0.0
    %561 = vmatpush1.msra.mxu0 0.0
    %562 = vmatprep.subr.mxu0 0.0
    %563 = vmatpush1.msra.mxu0 0.0
    %564 = vmatprep.subr.mxu0 0.0
    %565 = vmatpush1.msra.mxu0 0.0
    %566 = vmatprep.subr.mxu0 0.0
    %567 = vmatpush1.msra.mxu0 0.0
    %568 = vmatprep.subr.mxu0 0.0
    %569 = vmatpush1.msra.mxu0 0.0
    %570 = vmatprep.subr.mxu0 0.0
    %571 = vmatpush1.msra.mxu0 0.0
    %572 = vmatprep.subr.mxu0 0.0
    %573 = vmatpush1.msra.mxu0 0.0
    %574 = vmatprep.subr.mxu0 0.0
    %575 = vmatpush1.msra.mxu0 0.0
    %576 = vmatprep.mubr.f32.mxu0 0.0
    %v577 = vand.u32 %v96, 4294901760
    %578 = vmatmul.mubr.f32.gmra.mrb[0].mxu0 %v577
    %v579 = vpop.f32.mrb[0].mxu0
    %v580 = vadd.f32 %v505, %v579
    %v581 = vpop.f32.mrb[0].mxu0
    %582 = vdwg.mxu0
    %583 = vmatprep.subr.mxu0 0.0
    %v584 = vand.u32 %v73, 4294901760
    %585 = vmatpush1.msra.mxu0 %v584
    %586 = vmatprep.subr.mxu0 0.0
    %v587 = vand.u32 %v74, 4294901760
    %588 = vmatpush1.msra.mxu0 %v587
    %589 = vmatprep.subr.mxu0 0.0
    %v590 = vand.u32 %v75, 4294901760
    %591 = vmatpush1.msra.mxu0 %v590
    %592 = vmatprep.subr.mxu0 0.0
    %v593 = vand.u32 %v76, 4294901760
    %594 = vmatpush1.msra.mxu0 %v593
    %595 = vmatprep.subr.mxu0 0.0
    %v596 = vand.u32 %v77, 4294901760
    %597 = vmatpush1.msra.mxu0 %v596
    %598 = vmatprep.subr.mxu0 0.0
    %v599 = vand.u32 %v78, 4294901760
    %600 = vmatpush1.msra.mxu0 %v599
    %601 = vmatprep.subr.mxu0 0.0
    %v602 = vand.u32 %v79, 4294901760
    %603 = vmatpush1.msra.mxu0 %v602
    %604 = vmatprep.subr.mxu0 0.0
    %v605 = vand.u32 %v80, 4294901760
    %606 = vmatpush1.msra.mxu0 %v605
    %607 = vmatprep.subr.mxu0 0.0
    %v608 = vand.u32 %v81, 4294901760
    %609 = vmatpush1.msra.mxu0 %v608
    %610 = vmatprep.subr.mxu0 0.0
    %v611 = vand.u32 %v82, 4294901760
    %612 = vmatpush1.msra.mxu0 %v611
    %613 = vmatprep.subr.mxu0 0.0
    %v614 = vand.u32 %v83, 4294901760
    %615 = vmatpush1.msra.mxu0 %v614
    %616 = vmatprep.subr.mxu0 0.0
    %v617 = vand.u32 %v84, 4294901760
    %618 = vmatpush1.msra.mxu0 %v617
    %619 = vmatprep.subr.mxu0 0.0
    %v620 = vand.u32 %v85, 4294901760
    %621 = vmatpush1.msra.mxu0 %v620
    %622 = vmatprep.subr.mxu0 0.0
    %v623 = vand.u32 %v86, 4294901760
    %624 = vmatpush1.msra.mxu0 %v623
    %625 = vmatprep.subr.mxu0 0.0
    %v626 = vand.u32 %v87, 4294901760
    %627 = vmatpush1.msra.mxu0 %v626
    %628 = vmatprep.subr.mxu0 0.0
    %v629 = vand.u32 %v88, 4294901760
    %630 = vmatpush1.msra.mxu0 %v629
    %631 = vmatprep.subr.mxu0 0.0
    %632 = vmatpush1.msra.mxu0 0.0
    %633 = vmatprep.subr.mxu0 0.0
    %634 = vmatpush1.msra.mxu0 0.0
    %635 = vmatprep.subr.mxu0 0.0
    %636 = vmatpush1.msra.mxu0 0.0
    %637 = vmatprep.subr.mxu0 0.0
    %638 = vmatpush1.msra.mxu0 0.0
    %639 = vmatprep.subr.mxu0 0.0
    %640 = vmatpush1.msra.mxu0 0.0
    %641 = vmatprep.subr.mxu0 0.0
    %642 = vmatpush1.msra.mxu0 0.0
    %643 = vmatprep.subr.mxu0 0.0
    %644 = vmatpush1.msra.mxu0 0.0
    %645 = vmatprep.subr.mxu0 0.0
    %646 = vmatpush1.msra.mxu0 0.0
    %647 = vmatprep.subr.mxu0 0.0
    %648 = vmatpush1.msra.mxu0 0.0
    %649 = vmatprep.subr.mxu0 0.0
    %650 = vmatpush1.msra.mxu0 0.0
    %651 = vmatprep.subr.mxu0 0.0
    %652 = vmatpush1.msra.mxu0 0.0
    %653 = vmatprep.subr.mxu0 0.0
    %654 = vmatpush1.msra.mxu0 0.0
    %655 = vmatprep.subr.mxu0 0.0
    %656 = vmatpush1.msra.mxu0 0.0
    %657 = vmatprep.subr.mxu0 0.0
    %658 = vmatpush1.msra.mxu0 0.0
    %659 = vmatprep.subr.mxu0 0.0
    %660 = vmatpush1.msra.mxu0 0.0
    %661 = vmatprep.subr.mxu0 0.0
    %662 = vmatpush1.msra.mxu0 0.0
    %663 = vmatprep.mubr.f32.mxu0 0.0
    %v664 = vand.u32 %v72, 4294901760
    %v665 = vsub.f32 %v72, %v664
    %v666 = vand.u32 %v665, 4294901760
    %v667 = vsub.f32 %v665, %v666
    %v668 = vand.u32 %v667, 4294901760
    %669 = vmatmul.mubr.f32.gmra.mrb[0].mxu0 %v668
    %v670 = vpop.f32.mrb[0].mxu0
    %v671 = vadd.f32 %v580, %v670
    %v672 = vpop.f32.mrb[0].mxu0
    %673 = vdwg.mxu0
    %674 = vmatprep.subr.mxu0 0.0
    %v675 = vand.u32 %v73, 4294901760
    %v676 = vsub.f32 %v73, %v675
    %v677 = vand.u32 %v676, 4294901760
    %v678 = vsub.f32 %v676, %v677
    %v679 = vand.u32 %v678, 4294901760
    %680 = vmatpush1.msra.mxu0 %v679
    %681 = vmatprep.subr.mxu0 0.0
    %v682 = vand.u32 %v74, 4294901760
    %v683 = vsub.f32 %v74, %v682
    %v684 = vand.u32 %v683, 4294901760
    %v685 = vsub.f32 %v683, %v684
    %v686 = vand.u32 %v685, 4294901760
    %687 = vmatpush1.msra.mxu0 %v686
    %688 = vmatprep.subr.mxu0 0.0
    %v689 = vand.u32 %v75, 4294901760
    %v690 = vsub.f32 %v75, %v689
    %v691 = vand.u32 %v690, 4294901760
    %v692 = vsub.f32 %v690, %v691
    %v693 = vand.u32 %v692, 4294901760
    %694 = vmatpush1.msra.mxu0 %v693
    %695 = vmatprep.subr.mxu0 0.0
    %v696 = vand.u32 %v76, 4294901760
    %v697 = vsub.f32 %v76, %v696
    %v698 = vand.u32 %v697, 4294901760
    %v699 = vsub.f32 %v697, %v698
    %v700 = vand.u32 %v699, 4294901760
    %701 = vmatpush1.msra.mxu0 %v700
    %702 = vmatprep.subr.mxu0 0.0
    %v703 = vand.u32 %v77, 4294901760
    %v704 = vsub.f32 %v77, %v703
    %v705 = vand.u32 %v704, 4294901760
    %v706 = vsub.f32 %v704, %v705
    %v707 = vand.u32 %v706, 4294901760
    %708 = vmatpush1.msra.mxu0 %v707
    %709 = vmatprep.subr.mxu0 0.0
    %v710 = vand.u32 %v78, 4294901760
    %v711 = vsub.f32 %v78, %v710
    %v712 = vand.u32 %v711, 4294901760
    %v713 = vsub.f32 %v711, %v712
    %v714 = vand.u32 %v713, 4294901760
    %715 = vmatpush1.msra.mxu0 %v714
    %716 = vmatprep.subr.mxu0 0.0
    %v717 = vand.u32 %v79, 4294901760
    %v718 = vsub.f32 %v79, %v717
    %v719 = vand.u32 %v718, 4294901760
    %v720 = vsub.f32 %v718, %v719
    %v721 = vand.u32 %v720, 4294901760
    %722 = vmatpush1.msra.mxu0 %v721
    %723 = vmatprep.subr.mxu0 0.0
    %v724 = vand.u32 %v80, 4294901760
    %v725 = vsub.f32 %v80, %v724
    %v726 = vand.u32 %v725, 4294901760
    %v727 = vsub.f32 %v725, %v726
    %v728 = vand.u32 %v727, 4294901760
    %729 = vmatpush1.msra.mxu0 %v728
    %730 = vmatprep.subr.mxu0 0.0
    %v731 = vand.u32 %v81, 4294901760
    %v732 = vsub.f32 %v81, %v731
    %v733 = vand.u32 %v732, 4294901760
    %v734 = vsub.f32 %v732, %v733
    %v735 = vand.u32 %v734, 4294901760
    %736 = vmatpush1.msra.mxu0 %v735
    %737 = vmatprep.subr.mxu0 0.0
    %v738 = vand.u32 %v82, 4294901760
    %v739 = vsub.f32 %v82, %v738
    %v740 = vand.u32 %v739, 4294901760
    %v741 = vsub.f32 %v739, %v740
    %v742 = vand.u32 %v741, 4294901760
    %743 = vmatpush1.msra.mxu0 %v742
    %744 = vmatprep.subr.mxu0 0.0
    %v745 = vand.u32 %v83, 4294901760
    %v746 = vsub.f32 %v83, %v745
    %v747 = vand.u32 %v746, 4294901760
    %v748 = vsub.f32 %v746, %v747
    %v749 = vand.u32 %v748, 4294901760
    %750 = vmatpush1.msra.mxu0 %v749
    %751 = vmatprep.subr.mxu0 0.0
    %v752 = vand.u32 %v84, 4294901760
    %v753 = vsub.f32 %v84, %v752
    %v754 = vand.u32 %v753, 4294901760
    %v755 = vsub.f32 %v753, %v754
    %v756 = vand.u32 %v755, 4294901760
    %757 = vmatpush1.msra.mxu0 %v756
    %758 = vmatprep.subr.mxu0 0.0
    %v759 = vand.u32 %v85, 4294901760
    %v760 = vsub.f32 %v85, %v759
    %v761 = vand.u32 %v760, 4294901760
    %v762 = vsub.f32 %v760, %v761
    %v763 = vand.u32 %v762, 4294901760
    %764 = vmatpush1.msra.mxu0 %v763
    %765 = vmatprep.subr.mxu0 0.0
    %v766 = vand.u32 %v86, 4294901760
    %v767 = vsub.f32 %v86, %v766
    %v768 = vand.u32 %v767, 4294901760
    %v769 = vsub.f32 %v767, %v768
    %v770 = vand.u32 %v769, 4294901760
    %771 = vmatpush1.msra.mxu0 %v770
    %772 = vmatprep.subr.mxu0 0.0
    %v773 = vand.u32 %v87, 4294901760
    %v774 = vsub.f32 %v87, %v773
    %v775 = vand.u32 %v774, 4294901760
    %v776 = vsub.f32 %v774, %v775
    %v777 = vand.u32 %v776, 4294901760
    %778 = vmatpush1.msra.mxu0 %v777
    %779 = vmatprep.subr.mxu0 0.0
    %v780 = vand.u32 %v88, 4294901760
    %v781 = vsub.f32 %v88, %v780
    %v782 = vand.u32 %v781, 4294901760
    %v783 = vsub.f32 %v781, %v782
    %v784 = vand.u32 %v783, 4294901760
    %785 = vmatpush1.msra.mxu0 %v784
    %786 = vmatprep.subr.mxu0 0.0
    %787 = vmatpush1.msra.mxu0 0.0
    %788 = vmatprep.subr.mxu0 0.0
    %789 = vmatpush1.msra.mxu0 0.0
    %790 = vmatprep.subr.mxu0 0.0
    %791 = vmatpush1.msra.mxu0 0.0
    %792 = vmatprep.subr.mxu0 0.0
    %793 = vmatpush1.msra.mxu0 0.0
    %794 = vmatprep.subr.mxu0 0.0
    %795 = vmatpush1.msra.mxu0 0.0
    %796 = vmatprep.subr.mxu0 0.0
    %797 = vmatpush1.msra.mxu0 0.0
    %798 = vmatprep.subr.mxu0 0.0
    %799 = vmatpush1.msra.mxu0 0.0
    %800 = vmatprep.subr.mxu0 0.0
    %801 = vmatpush1.msra.mxu0 0.0
    %802 = vmatprep.subr.mxu0 0.0
    %803 = vmatpush1.msra.mxu0 0.0
    %804 = vmatprep.subr.mxu0 0.0
    %805 = vmatpush1.msra.mxu0 0.0
    %806 = vmatprep.subr.mxu0 0.0
    %807 = vmatpush1.msra.mxu0 0.0
    %808 = vmatprep.subr.mxu0 0.0
    %809 = vmatpush1.msra.mxu0 0.0
    %810 = vmatprep.subr.mxu0 0.0
    %811 = vmatpush1.msra.mxu0 0.0
    %812 = vmatprep.subr.mxu0 0.0
    %813 = vmatpush1.msra.mxu0 0.0
    %814 = vmatprep.subr.mxu0 0.0
    %815 = vmatpush1.msra.mxu0 0.0
    %816 = vmatprep.subr.mxu0 0.0
    %817 = vmatpush1.msra.mxu0 0.0
    %818 = vmatprep.mubr.f32.mxu0 0.0
    %v819 = vand.u32 %v72, 4294901760
    %820 = vmatmul.mubr.f32.gmra.mrb[0].mxu0 %v819
    %v821 = vpop.f32.mrb[0].mxu0
    %v822 = vadd.f32 %v671, %v821
    %v823 = vpop.f32.mrb[0].mxu0
    %824 = vdwg.mxu0
    %825 = vmatprep.subr.mxu0 0.0
    %v826 = vand.u32 %v73, 4294901760
    %v827 = vsub.f32 %v73, %v826
    %828 = vmatpush1.msra.mxu0 %v827
    %829 = vmatprep.subr.mxu0 0.0
    %v830 = vand.u32 %v74, 4294901760
    %v831 = vsub.f32 %v74, %v830
    %832 = vmatpush1.msra.mxu0 %v831
    %833 = vmatprep.subr.mxu0 0.0
    %v834 = vand.u32 %v75, 4294901760
    %v835 = vsub.f32 %v75, %v834
    %836 = vmatpush1.msra.mxu0 %v835
    %837 = vmatprep.subr.mxu0 0.0
    %v838 = vand.u32 %v76, 4294901760
    %v839 = vsub.f32 %v76, %v838
    %840 = vmatpush1.msra.mxu0 %v839
    %841 = vmatprep.subr.mxu0 0.0
    %v842 = vand.u32 %v77, 4294901760
    %v843 = vsub.f32 %v77, %v842
    %844 = vmatpush1.msra.mxu0 %v843
    %845 = vmatprep.subr.mxu0 0.0
    %v846 = vand.u32 %v78, 4294901760
    %v847 = vsub.f32 %v78, %v846
    %848 = vmatpush1.msra.mxu0 %v847
    %849 = vmatprep.subr.mxu0 0.0
    %v850 = vand.u32 %v79, 4294901760
    %v851 = vsub.f32 %v79, %v850
    %852 = vmatpush1.msra.mxu0 %v851
    %853 = vmatprep.subr.mxu0 0.0
    %v854 = vand.u32 %v80, 4294901760
    %v855 = vsub.f32 %v80, %v854
    %856 = vmatpush1.msra.mxu0 %v855
    %857 = vmatprep.subr.mxu0 0.0
    %v858 = vand.u32 %v81, 4294901760
    %v859 = vsub.f32 %v81, %v858
    %860 = vmatpush1.msra.mxu0 %v859
    %861 = vmatprep.subr.mxu0 0.0
    %v862 = vand.u32 %v82, 4294901760
    %v863 = vsub.f32 %v82, %v862
    %864 = vmatpush1.msra.mxu0 %v863
    %865 = vmatprep.subr.mxu0 0.0
    %v866 = vand.u32 %v83, 4294901760
    %v867 = vsub.f32 %v83, %v866
    %868 = vmatpush1.msra.mxu0 %v867
    %869 = vmatprep.subr.mxu0 0.0
    %v870 = vand.u32 %v84, 4294901760
    %v871 = vsub.f32 %v84, %v870
    %872 = vmatpush1.msra.mxu0 %v871
    %873 = vmatprep.subr.mxu0 0.0
    %v874 = vand.u32 %v85, 4294901760
    %v875 = vsub.f32 %v85, %v874
    %876 = vmatpush1.msra.mxu0 %v875
    %877 = vmatprep.subr.mxu0 0.0
    %v878 = vand.u32 %v86, 4294901760
    %v879 = vsub.f32 %v86, %v878
    %880 = vmatpush1.msra.mxu0 %v879
    %881 = vmatprep.subr.mxu0 0.0
    %v882 = vand.u32 %v87, 4294901760
    %v883 = vsub.f32 %v87, %v882
    %884 = vmatpush1.msra.mxu0 %v883
    %885 = vmatprep.subr.mxu0 0.0
    %v886 = vand.u32 %v88, 4294901760
    %v887 = vsub.f32 %v88, %v886
    %888 = vmatpush1.msra.mxu0 %v887
    %889 = vmatprep.subr.mxu0 0.0
    %890 = vmatpush1.msra.mxu0 0.0
    %891 = vmatprep.subr.mxu0 0.0
    %892 = vmatpush1.msra.mxu0 0.0
    %893 = vmatprep.subr.mxu0 0.0
    %894 = vmatpush1.msra.mxu0 0.0
    %895 = vmatprep.subr.mxu0 0.0
    %896 = vmatpush1.msra.mxu0 0.0
    %897 = vmatprep.subr.mxu0 0.0
    %898 = vmatpush1.msra.mxu0 0.0
    %899 = vmatprep.subr.mxu0 0.0
    %900 = vmatpush1.msra.mxu0 0.0
    %901 = vmatprep.subr.mxu0 0.0
    %902 = vmatpush1.msra.mxu0 0.0
    %903 = vmatprep.subr.mxu0 0.0
    %904 = vmatpush1.msra.mxu0 0.0
    %905 = vmatprep.subr.mxu0 0.0
    %906 = vmatpush1.msra.mxu0 0.0
    %907 = vmatprep.subr.mxu0 0.0
    %908 = vmatpush1.msra.mxu0 0.0
    %909 = vmatprep.subr.mxu0 0.0
    %910 = vmatpush1.msra.mxu0 0.0
    %911 = vmatprep.subr.mxu0 0.0
    %912 = vmatpush1.msra.mxu0 0.0
    %913 = vmatprep.subr.mxu0 0.0
    %914 = vmatpush1.msra.mxu0 0.0
    %915 = vmatprep.subr.mxu0 0.0
    %916 = vmatpush1.msra.mxu0 0.0
    %917 = vmatprep.subr.mxu0 0.0
    %918 = vmatpush1.msra.mxu0 0.0
    %919 = vmatprep.subr.mxu0 0.0
    %920 = vmatpush1.msra.mxu0 0.0
    %921 = vmatprep.mubr.f32.mxu0 0.0
    %v922 = vand.u32 %v72, 4294901760
    %v923 = vsub.f32 %v72, %v922
    %924 = vmatmul.mubr.f32.gmra.mrb[0].mxu0 %v923
    %v925 = vpop.f32.mrb[0].mxu0
    %v926 = vadd.f32 %v822, %v925
    %v927 = vpop.f32.mrb[0].mxu0
    %928 = vdwg.mxu0
    %929 = vmatprep.subr.mxu0 0.0
    %v930 = vand.u32 %v73, 4294901760
    %931 = vmatpush1.msra.mxu0 %v930
    %932 = vmatprep.subr.mxu0 0.0
    %v933 = vand.u32 %v74, 4294901760
    %934 = vmatpush1.msra.mxu0 %v933
    %935 = vmatprep.subr.mxu0 0.0
    %v936 = vand.u32 %v75, 4294901760
    %937 = vmatpush1.msra.mxu0 %v936
    %938 = vmatprep.subr.mxu0 0.0
    %v939 = vand.u32 %v76, 4294901760
    %940 = vmatpush1.msra.mxu0 %v939
    %941 = vmatprep.subr.mxu0 0.0
    %v942 = vand.u32 %v77, 4294901760
    %943 = vmatpush1.msra.mxu0 %v942
    %944 = vmatprep.subr.mxu0 0.0
    %v945 = vand.u32 %v78, 4294901760
    %946 = vmatpush1.msra.mxu0 %v945
    %947 = vmatprep.subr.mxu0 0.0
    %v948 = vand.u32 %v79, 4294901760
    %949 = vmatpush1.msra.mxu0 %v948
    %950 = vmatprep.subr.mxu0 0.0
    %v951 = vand.u32 %v80, 4294901760
    %952 = vmatpush1.msra.mxu0 %v951
    %953 = vmatprep.subr.mxu0 0.0
    %v954 = vand.u32 %v81, 4294901760
    %955 = vmatpush1.msra.mxu0 %v954
    %956 = vmatprep.subr.mxu0 0.0
    %v957 = vand.u32 %v82, 4294901760
    %958 = vmatpush1.msra.mxu0 %v957
    %959 = vmatprep.subr.mxu0 0.0
    %v960 = vand.u32 %v83, 4294901760
    %961 = vmatpush1.msra.mxu0 %v960
    %962 = vmatprep.subr.mxu0 0.0
    %v963 = vand.u32 %v84, 4294901760
    %964 = vmatpush1.msra.mxu0 %v963
    %965 = vmatprep.subr.mxu0 0.0
    %v966 = vand.u32 %v85, 4294901760
    %967 = vmatpush1.msra.mxu0 %v966
    %968 = vmatprep.subr.mxu0 0.0
    %v969 = vand.u32 %v86, 4294901760
    %970 = vmatpush1.msra.mxu0 %v969
    %971 = vmatprep.subr.mxu0 0.0
    %v972 = vand.u32 %v87, 4294901760
    %973 = vmatpush1.msra.mxu0 %v972
    %974 = vmatprep.subr.mxu0 0.0
    %v975 = vand.u32 %v88, 4294901760
    %976 = vmatpush1.msra.mxu0 %v975
    %977 = vmatprep.subr.mxu0 0.0
    %978 = vmatpush1.msra.mxu0 0.0
    %979 = vmatprep.subr.mxu0 0.0
    %980 = vmatpush1.msra.mxu0 0.0
    %981 = vmatprep.subr.mxu0 0.0
    %982 = vmatpush1.msra.mxu0 0.0
    %983 = vmatprep.subr.mxu0 0.0
    %984 = vmatpush1.msra.mxu0 0.0
    %985 = vmatprep.subr.mxu0 0.0
    %986 = vmatpush1.msra.mxu0 0.0
    %987 = vmatprep.subr.mxu0 0.0
    %988 = vmatpush1.msra.mxu0 0.0
    %989 = vmatprep.subr.mxu0 0.0
    %990 = vmatpush1.msra.mxu0 0.0
    %991 = vmatprep.subr.mxu0 0.0
    %992 = vmatpush1.msra.mxu0 0.0
    %993 = vmatprep.subr.mxu0 0.0
    %994 = vmatpush1.msra.mxu0 0.0
    %995 = vmatprep.subr.mxu0 0.0
    %996 = vmatpush1.msra.mxu0 0.0
    %997 = vmatprep.subr.mxu0 0.0
    %998 = vmatpush1.msra.mxu0 0.0
    %999 = vmatprep.subr.mxu0 0.0
    %1000 = vmatpush1.msra.mxu0 0.0
    %1001 = vmatprep.subr.mxu0 0.0
    %1002 = vmatpush1.msra.mxu0 0.0
    %1003 = vmatprep.subr.mxu0 0.0
    %1004 = vmatpush1.msra.mxu0 0.0
    %1005 = vmatprep.subr.mxu0 0.0
    %1006 = vmatpush1.msra.mxu0 0.0
    %1007 = vmatprep.subr.mxu0 0.0
    %1008 = vmatpush1.msra.mxu0 0.0
    %1009 = vmatprep.mubr.f32.mxu0 0.0
    %v1010 = vand.u32 %v72, 4294901760
    %v1011 = vsub.f32 %v72, %v1010
    %v1012 = vand.u32 %v1011, 4294901760
    %1013 = vmatmul.mubr.f32.gmra.mrb[0].mxu0 %v1012
    %v1014 = vpop.f32.mrb[0].mxu0
    %v1015 = vadd.f32 %v926, %v1014
    %v1016 = vpop.f32.mrb[0].mxu0
    %1017 = vdwg.mxu0
    %1018 = vmatprep.subr.mxu0 0.0
    %v1019 = vand.u32 %v73, 4294901760
    %v1020 = vsub.f32 %v73, %v1019
    %v1021 = vand.u32 %v1020, 4294901760
    %1022 = vmatpush1.msra.mxu0 %v1021
    %1023 = vmatprep.subr.mxu0 0.0
    %v1024 = vand.u32 %v74, 4294901760
    %v1025 = vsub.f32 %v74, %v1024
    %v1026 = vand.u32 %v1025, 4294901760
    %1027 = vmatpush1.msra.mxu0 %v1026
    %1028 = vmatprep.subr.mxu0 0.0
    %v1029 = vand.u32 %v75, 4294901760
    %v1030 = vsub.f32 %v75, %v1029
    %v1031 = vand.u32 %v1030, 4294901760
    %1032 = vmatpush1.msra.mxu0 %v1031
    %1033 = vmatprep.subr.mxu0 0.0
    %v1034 = vand.u32 %v76, 4294901760
    %v1035 = vsub.f32 %v76, %v1034
    %v1036 = vand.u32 %v1035, 4294901760
    %1037 = vmatpush1.msra.mxu0 %v1036
    %1038 = vmatprep.subr.mxu0 0.0
    %v1039 = vand.u32 %v77, 4294901760
    %v1040 = vsub.f32 %v77, %v1039
    %v1041 = vand.u32 %v1040, 4294901760
    %1042 = vmatpush1.msra.mxu0 %v1041
    %1043 = vmatprep.subr.mxu0 0.0
    %v1044 = vand.u32 %v78, 4294901760
    %v1045 = vsub.f32 %v78, %v1044
    %v1046 = vand.u32 %v1045, 4294901760
    %1047 = vmatpush1.msra.mxu0 %v1046
    %1048 = vmatprep.subr.mxu0 0.0
    %v1049 = vand.u32 %v79, 4294901760
    %v1050 = vsub.f32 %v79, %v1049
    %v1051 = vand.u32 %v1050, 4294901760
    %1052 = vmatpush1.msra.mxu0 %v1051
    %1053 = vmatprep.subr.mxu0 0.0
    %v1054 = vand.u32 %v80, 4294901760
    %v1055 = vsub.f32 %v80, %v1054
    %v1056 = vand.u32 %v1055, 4294901760
    %1057 = vmatpush1.msra.mxu0 %v1056
    %1058 = vmatprep.subr.mxu0 0.0
    %v1059 = vand.u32 %v81, 4294901760
    %v1060 = vsub.f32 %v81, %v1059
    %v1061 = vand.u32 %v1060, 4294901760
    %1062 = vmatpush1.msra.mxu0 %v1061
    %1063 = vmatprep.subr.mxu0 0.0
    %v1064 = vand.u32 %v82, 4294901760
    %v1065 = vsub.f32 %v82, %v1064
    %v1066 = vand.u32 %v1065, 4294901760
    %1067 = vmatpush1.msra.mxu0 %v1066
    %1068 = vmatprep.subr.mxu0 0.0
    %v1069 = vand.u32 %v83, 4294901760
    %v1070 = vsub.f32 %v83, %v1069
    %v1071 = vand.u32 %v1070, 4294901760
    %1072 = vmatpush1.msra.mxu0 %v1071
    %1073 = vmatprep.subr.mxu0 0.0
    %v1074 = vand.u32 %v84, 4294901760
    %v1075 = vsub.f32 %v84, %v1074
    %v1076 = vand.u32 %v1075, 4294901760
    %1077 = vmatpush1.msra.mxu0 %v1076
    %1078 = vmatprep.subr.mxu0 0.0
    %v1079 = vand.u32 %v85, 4294901760
    %v1080 = vsub.f32 %v85, %v1079
    %v1081 = vand.u32 %v1080, 4294901760
    %1082 = vmatpush1.msra.mxu0 %v1081
    %1083 = vmatprep.subr.mxu0 0.0
    %v1084 = vand.u32 %v86, 4294901760
    %v1085 = vsub.f32 %v86, %v1084
    %v1086 = vand.u32 %v1085, 4294901760
    %1087 = vmatpush1.msra.mxu0 %v1086
    %1088 = vmatprep.subr.mxu0 0.0
    %v1089 = vand.u32 %v87, 4294901760
    %v1090 = vsub.f32 %v87, %v1089
    %v1091 = vand.u32 %v1090, 4294901760
    %1092 = vmatpush1.msra.mxu0 %v1091
    %1093 = vmatprep.subr.mxu0 0.0
    %v1094 = vand.u32 %v88, 4294901760
    %v1095 = vsub.f32 %v88, %v1094
    %v1096 = vand.u32 %v1095, 4294901760
    %1097 = vmatpush1.msra.mxu0 %v1096
    %1098 = vmatprep.subr.mxu0 0.0
    %1099 = vmatpush1.msra.mxu0 0.0
    %1100 = vmatprep.subr.mxu0 0.0
    %1101 = vmatpush1.msra.mxu0 0.0
    %1102 = vmatprep.subr.mxu0 0.0
    %1103 = vmatpush1.msra.mxu0 0.0
    %1104 = vmatprep.subr.mxu0 0.0
    %1105 = vmatpush1.msra.mxu0 0.0
    %1106 = vmatprep.subr.mxu0 0.0
    %1107 = vmatpush1.msra.mxu0 0.0
    %1108 = vmatprep.subr.mxu0 0.0
    %1109 = vmatpush1.msra.mxu0 0.0
    %1110 = vmatprep.subr.mxu0 0.0
    %1111 = vmatpush1.msra.mxu0 0.0
    %1112 = vmatprep.subr.mxu0 0.0
    %1113 = vmatpush1.msra.mxu0 0.0
    %1114 = vmatprep.subr.mxu0 0.0
    %1115 = vmatpush1.msra.mxu0 0.0
    %1116 = vmatprep.subr.mxu0 0.0
    %1117 = vmatpush1.msra.mxu0 0.0
    %1118 = vmatprep.subr.mxu0 0.0
    %1119 = vmatpush1.msra.mxu0 0.0
    %1120 = vmatprep.subr.mxu0 0.0
    %1121 = vmatpush1.msra.mxu0 0.0
    %1122 = vmatprep.subr.mxu0 0.0
    %1123 = vmatpush1.msra.mxu0 0.0
    %1124 = vmatprep.subr.mxu0 0.0
    %1125 = vmatpush1.msra.mxu0 0.0
    %1126 = vmatprep.subr.mxu0 0.0
    %1127 = vmatpush1.msra.mxu0 0.0
    %1128 = vmatprep.subr.mxu0 0.0
    %1129 = vmatpush1.msra.mxu0 0.0
    %1130 = vmatprep.mubr.f32.mxu0 0.0
    %v1131 = vand.u32 %v72, 4294901760
    %1132 = vmatmul.mubr.f32.gmra.mrb[0].mxu0 %v1131
    %v1133 = vpop.f32.mrb[0].mxu0
    %v1134 = vadd.f32 %v1015, %v1133
    %v1135 = vpop.f32.mrb[0].mxu0
    %1136 = vdwg.mxu0
    %1137 = vmatprep.subr.mxu0 0.0
    %v1138 = vand.u32 %v73, 4294901760
    %1139 = vmatpush1.msra.mxu0 %v1138
    %1140 = vmatprep.subr.mxu0 0.0
    %v1141 = vand.u32 %v74, 4294901760
    %1142 = vmatpush1.msra.mxu0 %v1141
    %1143 = vmatprep.subr.mxu0 0.0
    %v1144 = vand.u32 %v75, 4294901760
    %1145 = vmatpush1.msra.mxu0 %v1144
    %1146 = vmatprep.subr.mxu0 0.0
    %v1147 = vand.u32 %v76, 4294901760
    %1148 = vmatpush1.msra.mxu0 %v1147
    %1149 = vmatprep.subr.mxu0 0.0
    %v1150 = vand.u32 %v77, 4294901760
    %1151 = vmatpush1.msra.mxu0 %v1150
    %1152 = vmatprep.subr.mxu0 0.0
    %v1153 = vand.u32 %v78, 4294901760
    %1154 = vmatpush1.msra.mxu0 %v1153
    %1155 = vmatprep.subr.mxu0 0.0
    %v1156 = vand.u32 %v79, 4294901760
    %1157 = vmatpush1.msra.mxu0 %v1156
    %1158 = vmatprep.subr.mxu0 0.0
    %v1159 = vand.u32 %v80, 4294901760
    %1160 = vmatpush1.msra.mxu0 %v1159
    %1161 = vmatprep.subr.mxu0 0.0
    %v1162 = vand.u32 %v81, 4294901760
    %1163 = vmatpush1.msra.mxu0 %v1162
    %1164 = vmatprep.subr.mxu0 0.0
    %v1165 = vand.u32 %v82, 4294901760
    %1166 = vmatpush1.msra.mxu0 %v1165
    %1167 = vmatprep.subr.mxu0 0.0
    %v1168 = vand.u32 %v83, 4294901760
    %1169 = vmatpush1.msra.mxu0 %v1168
    %1170 = vmatprep.subr.mxu0 0.0
    %v1171 = vand.u32 %v84, 4294901760
    %1172 = vmatpush1.msra.mxu0 %v1171
    %1173 = vmatprep.subr.mxu0 0.0
    %v1174 = vand.u32 %v85, 4294901760
    %1175 = vmatpush1.msra.mxu0 %v1174
    %1176 = vmatprep.subr.mxu0 0.0
    %v1177 = vand.u32 %v86, 4294901760
    %1178 = vmatpush1.msra.mxu0 %v1177
    %1179 = vmatprep.subr.mxu0 0.0
    %v1180 = vand.u32 %v87, 4294901760
    %1181 = vmatpush1.msra.mxu0 %v1180
    %1182 = vmatprep.subr.mxu0 0.0
    %v1183 = vand.u32 %v88, 4294901760
    %1184 = vmatpush1.msra.mxu0 %v1183
    %1185 = vmatprep.subr.mxu0 0.0
    %1186 = vmatpush1.msra.mxu0 0.0
    %1187 = vmatprep.subr.mxu0 0.0
    %1188 = vmatpush1.msra.mxu0 0.0
    %1189 = vmatprep.subr.mxu0 0.0
    %1190 = vmatpush1.msra.mxu0 0.0
    %1191 = vmatprep.subr.mxu0 0.0
    %1192 = vmatpush1.msra.mxu0 0.0
    %1193 = vmatprep.subr.mxu0 0.0
    %1194 = vmatpush1.msra.mxu0 0.0
    %1195 = vmatprep.subr.mxu0 0.0
    %1196 = vmatpush1.msra.mxu0 0.0
    %1197 = vmatprep.subr.mxu0 0.0
    %1198 = vmatpush1.msra.mxu0 0.0
    %1199 = vmatprep.subr.mxu0 0.0
    %1200 = vmatpush1.msra.mxu0 0.0
    %1201 = vmatprep.subr.mxu0 0.0
    %1202 = vmatpush1.msra.mxu0 0.0
    %1203 = vmatprep.subr.mxu0 0.0
    %1204 = vmatpush1.msra.mxu0 0.0
    %1205 = vmatprep.subr.mxu0 0.0
    %1206 = vmatpush1.msra.mxu0 0.0
    %1207 = vmatprep.subr.mxu0 0.0
    %1208 = vmatpush1.msra.mxu0 0.0
    %1209 = vmatprep.subr.mxu0 0.0
    %1210 = vmatpush1.msra.mxu0 0.0
    %1211 = vmatprep.subr.mxu0 0.0
    %1212 = vmatpush1.msra.mxu0 0.0
    %1213 = vmatprep.subr.mxu0 0.0
    %1214 = vmatpush1.msra.mxu0 0.0
    %1215 = vmatprep.subr.mxu0 0.0
    %1216 = vmatpush1.msra.mxu0 0.0
    %1217 = vmatprep.mubr.f32.mxu0 0.0
    %v1218 = vand.u32 %v72, 4294901760
    %1219 = vmatmul.mubr.f32.gmra.mrb[0].mxu0 %v1218
    %v1220 = vpop.f32.mrb[0].mxu0
    %v1221 = vadd.f32 %v1134, %v1220
    %v1222 = vpop.f32.mrb[0].mxu0
    %1223 = vdwg.mxu0
    %v1224 = vld [vmem:[%s4] sm:$0x1]
    %v1226 = vlaneseq
    %v1227 = vshrl.u32 %v1226, 7
    %v1228 = vsub.s32 0, %v1227
    %v1229 = vrot.slane %v1224, %v1228
    %v1231 = vadd.f32 %v1221, %v1229
    %1232 = vst [vmem:[#allocation10] sm:$0xff] %v1231
    // Predicated region
    $region38: #{tpu_custom_call.1} parent=1 // pred_check
      _
    $region39: #{tpu_custom_call.1} parent=1 // pred_check_branch
      %1234 = sbr.rel (0) target = $region41
    $region40: #{tpu_custom_call.1} parent=1 // pred_region
      %s1236 = ssub.s32 128, 128
      %1237 = vsyncadd [#allocation4], %s1236
      %s1239 = sshll.u32 [#allocation10], 4
      %s1240 = int_to_ptr.vmem [resolvable:$true] %s1239
      %1242 = dma.vmem_to_hbm [thread:$0]  %s1240, 128, %s5, [#allocation4]
    $region41: #{tpu_custom_call.1} parent=1 // pred_fallthru
      _
    // Predicated region
    $region42: #{tpu_custom_call.1} parent=1 // pred_check
      _
    $region43: #{tpu_custom_call.1} parent=1 // pred_check_branch
      %1244 = sbr.rel (0) target = $region45
    $region44: #{tpu_custom_call.1} parent=1 // pred_region
      %1245 = dma.done [#allocation4], 128
    $region45: #{tpu_custom_call.1} parent=1 // pred_fallthru
      _
    %1246 = vsyncpa [#allocation3], 1
    %1247 = vsyncpa [#allocation6], 1
    %1248 = vsyncpa [#allocation9], 1
    %1249 = vsyncpa [#allocation4], 1

</llo_original>
